<compile_context>
chip_gen: v5e
topology: v5e:2x2
jax: 0.10.0
libtpu: 0.0.40
codegen_flags: <defaults>
</compile_context>

<pallas_src>
import functools
import math

import numpy as np
import jax
import jax.numpy as jnp
from jax.experimental import pallas as pl
from jax.experimental.pallas import tpu as pltpu


# ----------------------------------------------------------------------------
# One-time probe of pltpu.roll's rotation convention (cached; primed in
# __main__ BEFORE any jit so the cached int is used during tracing).
# ----------------------------------------------------------------------------
@functools.lru_cache(maxsize=None)
def _lane_roll_sign() -> int:
    """Sign s such that pltpu.roll(x, (s*d) % N, axis=-1)[c] == x[(c + d) % N]."""
    def probe(x_ref, o_ref):
        o_ref[...] = pltpu.roll(x_ref[...], 1, 1)

    x = jax.lax.broadcasted_iota(jnp.float32, (8, 128), 1)
    y = pl.pallas_call(probe, out_shape=jax.ShapeDtypeStruct((8, 128), jnp.float32))(x)
    # jnp.roll convention: result[0] == x[-1] == 127  ->  need shift = -d.
    return -1 if float(y[0, 0]) == 127.0 else 1


def _shift_rows(v, di, Hp, Wp):
    """out[h, :] = v[h + di, :]; vacated rows are zero (masked via kern anyway)."""
    z = jnp.zeros((abs(di), Wp), v.dtype)
    if di > 0:
        return jnp.concatenate([v[di:, :], z], axis=0)
    return jnp.concatenate([z, v[:Hp + di, :]], axis=0)


# ----------------------------------------------------------------------------
# Pallas kernel: one packed lane-group per grid step, full num_iter loop.
# ----------------------------------------------------------------------------
def _mean_field_kernel(x_ref, t_ref, k_ref, ret_ref, *,
                       Hp, Wp, K, base, num_iter, lane_sign):
    K2 = K * K
    half = K // 2
    D = math.log((1.0 - base) / base)          # (-log base) - (-log(1-base))

    x = x_ref[0]                               # (Hp, Wp)
    tgt = t_ref[0]                             # (Hp, Wp)
    ltgt = jnp.log(tgt)                        # loop-invariant; log(0) = -inf

    # Pairwise-kernel taps are loop-invariant: load once, keep in vregs.
    ktaps = [k_ref[0, p] for p in range(K2)]   # K2 x (Hp, Wp)

    # Static lane-shift amounts per tap column offset.
    lane_shift = {dj: (lane_sign * dj) % Wp for dj in range(-half, half + 1)}

    # unary init: f1 = (x*targets > 0.5) ? 1-base : base ;  diff = -log(f1)+log(f0)
    diff = jnp.where(x * tgt > 0.5, -D, D).astype(jnp.float32)

    for _ in range(num_iter):
        # row (sublane) shifts, shared by the K taps of each row offset
        rows = {0: diff}
        for di in range(1, half + 1):
            rows[di] = _shift_rows(diff, di, Hp, Wp)
            rows[-di] = _shift_rows(diff, -di, Hp, Wp)

        acc = jnp.zeros((Hp, Wp), jnp.float32)
        for p in range(K2):                    # KxK taps, fully unrolled
            di = p // K - half
            dj = p % K - half
            sh = rows[di]
            if dj != 0:                        # lane rotate on the XLU; wrap is masked
                sh = pltpu.roll(sh, lane_shift[dj], 1)
            acc = acc + ktaps[p] * sh          # boundary masks pre-folded into kern

        # normalized fg prob > 0.5  <=>  exp(-a1)*t > exp(-a0)  <=>  a1-a0 < log(t)
        diff = jnp.where(acc < ltgt, -D, D).astype(jnp.float32)

    ret_ref[0] = jnp.where(diff < 0.0, 1.0, 0.0).astype(jnp.float32)


# ----------------------------------------------------------------------------
# Host-side helpers
# ----------------------------------------------------------------------------
def _boundary_masks(K, H, W, Hp, Wp):
    """Per-tap validity masks (Unfold zero padding + packed-image lane edges)."""
    K2 = K * K
    half = K // 2
    hh = np.arange(Hp)[:, None]
    ww = np.arange(Wp)[None, :] % W
    masks = np.zeros((K2, Hp, Wp), np.float32)
    for p in range(K2):
        di = p // K - half
        dj = p % K - half
        ok = ((hh + di >= 0) & (hh + di < H) & (ww + dj >= 0) & (ww + dj < W))
        masks[p] = ok.astype(np.float32)
    return masks


def make_pairwise_kernel(feature_map, *, K=3, theta0=0.5, theta1=30.0, alpha0=3.0):
    """Plain-JAX parameter setup; mirrors MeanField.__init__ (feature_map + 10)."""
    B, C, H, W = feature_map.shape
    fm = feature_map.astype(jnp.float32) + 10.0
    pad = K // 2
    fm_p = jnp.pad(fm, ((0, 0), (0, 0), (pad, pad), (pad, pad)))
    patches = [fm_p[:, :, i:i + H, j:j + W] for i in range(K) for j in range(K)]
    unfold_fm = jnp.stack(patches, axis=2)                              # (B,C,K^2,H,W)
    content = -((unfold_fm - fm[:, :, None, :, :]) ** 2).sum(axis=1)    # (B,K^2,H,W)
    idx = jnp.arange(K * K)
    spatial = ((idx // K - K // 2) ** 2 + (idx % K - K // 2) ** 2).astype(jnp.float32)
    kern = alpha0 * jnp.exp(content / (2.0 * theta0 ** 2)
                            - spatial[None, :, None, None] / (2.0 * theta1 ** 2))
    return kern.astype(jnp.float32)                                     # (B,K^2,H,W)


def mean_field_forward(x, targets, kern, *, base=0.45, num_iter=20, K=3):
    """Equivalent of MeanField.forward(x, targets) -> (ret, valid)."""
    # TODO(synk): inter_img_mask path (None in the default forward) not implemented.
    B, _, H, W = x.shape
    K2 = K * K

    # Lane packing: G images side by side along the 128-lane axis.
    G = 128 // W if (W < 128 and 128 % W == 0) else 1
    NG = -(-B // G)
    Bpad = NG * G
    Hp = -(-H // 8) * 8
    Wp = -(-(G * W) // 128) * 128

    def pack(a):                                    # (B, C, H, W) -> (NG, C, Hp, Wp)
        C = a.shape[1]
        a = jnp.pad(a.astype(jnp.float32),
                    ((0, Bpad - B), (0, 0), (0, Hp - H), (0, 0)))
        a = a.reshape(NG, G, C, Hp, W).transpose(0, 2, 3, 1, 4).reshape(NG, C, Hp, G * W)
        if Wp > G * W:
            a = jnp.pad(a, ((0, 0), (0, 0), (0, 0), (0, Wp - G * W)))
        return a

    xw = pack(x)[:, 0]                              # (NG, Hp, Wp)
    tw = pack(targets)[:, 0]                        # (NG, Hp, Wp)
    # Fold the Unfold zero-padding / packing boundary masks into the pairwise kernel.
    kw = pack(kern) * jnp.asarray(_boundary_masks(K, H, W, Hp, Wp))[None]

    kernel_fn = functools.partial(
        _mean_field_kernel, Hp=Hp, Wp=Wp, K=K, base=base, num_iter=num_iter,
        lane_sign=_lane_roll_sign())

    retw = pl.pallas_call(
        kernel_fn,
        out_shape=jax.ShapeDtypeStruct((NG, Hp, Wp), jnp.float32),
        grid_spec=pltpu.PrefetchScalarGridSpec(
            num_scalar_prefetch=0,
            grid=(NG,),
            in_specs=[pl.BlockSpec((1, Hp, Wp), lambda g: (g, 0, 0)),
                      pl.BlockSpec((1, Hp, Wp), lambda g: (g, 0, 0)),
                      pl.BlockSpec((1, K2, Hp, Wp), lambda g: (g, 0, 0, 0))],
            out_specs=pl.BlockSpec((1, Hp, Wp), lambda g: (g, 0, 0)),
        ),
        # TODO(synk): for large H*W, tile H into K//2-halo row strips (2nd parallel
        # grid axis, helps v7x's 2 TCs) and raise vmem_limit_bytes; not needed here.
        compiler_params=pltpu.CompilerParams(dimension_semantics=("parallel",)),
    )(xw, tw, kw)

    # Unpack (NG, Hp, Wp) -> (B, 1, H, W).
    ret = retw[:, :, :G * W].reshape(NG, Hp, G, W).transpose(0, 2, 1, 3)
    ret = ret.reshape(Bpad, Hp, W)[:B, :H, :][:, None, :, :]

    # count / valid epilogue (tiny reduction; cheaper as plain XLA than a masked
    # (1,1,1) VMEM store from the kernel).
    count = ret.reshape(B, -1).sum(axis=1)
    valid = jnp.logical_and(count >= H * W * 0.05,
                            count <= H * W * 0.95).astype(jnp.float32)
    return ret, valid


# ----------------------------------------------------------------------------
# Pure-JAX port of the PyTorch forward (correctness reference only).
# ----------------------------------------------------------------------------
def mean_field_reference(x, targets, kern, *, base=0.45, num_iter=20, K=3):
    B, _, H, W = x.shape
    pad = K // 2
    xb = (x * targets > 0.5).astype(jnp.float32) * (1.0 - 2.0 * base) + base
    f = jnp.concatenate([1.0 - xb, xb], axis=1)            # (B, 2, H, W)
    kern_b = kern[:, None]                                  # (B, 1, K^2, H, W)
    for _ in range(num_iter):
        nl = -jnp.log(f)
        nl_p = jnp.pad(nl, ((0, 0), (0, 0), (pad, pad), (pad, pad)))
        unf = jnp.stack([nl_p[:, :, i:i + H, j:j + W]
                         for i in range(K) for j in range(K)], axis=2)
        aggre = (unf * kern_b).sum(axis=2)                  # (B, 2, H, W)
        g = jnp.exp(-aggre)
        g = jnp.concatenate([g[:, :1], g[:, 1:] * targets], axis=1)
        g = g + 1e-6
        g = g / g.sum(axis=1, keepdims=True)
        f = (g > 0.5).astype(jnp.float32) * (1.0 - 2.0 * base) + base
    ret = (f[:, 1:2] > 0.5).astype(jnp.float32)
    count = ret.reshape(B, -1).sum(axis=1)
    valid = jnp.logical_and(count >= H * W * 0.05,
                            count <= H * W * 0.95).astype(jnp.float32)
    return ret, valid


if __name__ == "__main__":
    _lane_roll_sign()   # prime the cached roll-direction probe outside of jit

    key = jax.random.PRNGKey(0)
    k1, k2, k3 = jax.random.split(key, 3)
    B, C, H, W = 2, 4, 16, 16

    # Smooth-ish synthetic features: neighbouring pixels get O(1) pairwise weights,
    # as they would for a real backbone feature map.
    feature_map = 0.3 * jax.random.normal(k1, (B, C, H, W), dtype=jnp.float32)
    x = jax.random.uniform(k2, (B, 1, H, W), dtype=jnp.float32)
    targets = (jax.random.uniform(k3, (B, 1, H, W)) > 0.3).astype(jnp.float32)

    kern = make_pairwise_kernel(feature_map)                   # (B, 9, H, W)

    ret, valid = jax.jit(mean_field_forward)(x, targets, kern)
    ret, valid = jax.block_until_ready((ret, valid))

    assert ret.shape == (B, 1, H, W) and valid.shape == (B,)
    assert bool(jnp.all(jnp.logical_or(ret == 0.0, ret == 1.0)))
    assert bool(jnp.all(jnp.logical_or(valid == 0.0, valid == 1.0)))

    # Cross-check against the direct JAX port of the PyTorch reference.  Small
    # tolerance only covers float near-ties at the 0.5 decision boundary.
    ret_ref, valid_ref = jax.jit(mean_field_reference)(x, targets, kern)
    mismatch = float(jnp.mean(jnp.abs(ret - ret_ref)))
    assert mismatch <= 0.02, f"ret mismatch fraction vs reference: {mismatch}"
    assert bool(jnp.all(valid == valid_ref)), (valid, valid_ref)

    print("KERNEL_OK")
</pallas_src>

<mosaic_0001>
module attributes {stable_mosaic.version = 11 : i64} {
  func.func @probe(%arg0: memref<8x128xf32, #tpu.memory_space<vmem>>, %arg1: memref<8x128xf32, #tpu.memory_space<vmem>>) attributes {dimension_semantics = [], scalar_prefetch = 0 : i64, scratch_operands = 0 : i64, tpu.core_type = #tpu.core_type<tc>} {
    %c0 = arith.constant 0 : index
    %c0_0 = arith.constant 0 : index
    %0 = vector.load %arg0[%c0, %c0_0] : memref<8x128xf32, #tpu.memory_space<vmem>>, vector<8x128xf32>
    %c1_i32 = arith.constant 1 : i32
    %1 = tpu.dynamic_rotate %0 by %c1_i32 dim 1 : vector<8x128xf32>, i32 -> vector<8x128xf32>
    %c0_1 = arith.constant 0 : index
    %c0_2 = arith.constant 0 : index
    %2 = vector.load %arg1[%c0_1, %c0_2] : memref<8x128xf32, #tpu.memory_space<vmem>>, vector<8x128xf32>
    tpu.vector_store %arg1[%c0_1, %c0_2], %1 {strides = array<i32>} : memref<8x128xf32, #tpu.memory_space<vmem>>, vector<8x128xf32>,
    return
  }
}

</mosaic_0001>

<llo_original>
// kernel: tpu_custom_call.1
$region0: #{tpu_custom_call.1}
  #allocation0 [shape = 'u32[]', space=smem, size = 0x4, offset = 0x4, fixed_abs, tag = 'smem constant byte address 0x4 - core index']
  #allocation1 [shape = 'u32[72,128]{1,0:T(1,128)}', space=vmem, size = 0x9000, scoped, tag = 'internal scratch']
  %s0 = inlined_call_operand.hbm [shape: f32[8,128], index: 0, kind: input, shape index: {}]
  %s1 = inlined_call_operand.hbm [shape: f32[8,128], index: 1, kind: output, shape index: {}]
  %s2 = sld [smem:[#allocation0]]
  $region18: #{tpu_custom_call.1} parent=0
    _
  %s4 = ssub.s32 1, %s2
  %s5 = scalar_select 0, %s4, %s2
  $region1: #{tpu_custom_call.1} parent=0
    #allocation2 [shape = 'u8[4096]{0}', space=vmem, size = 0x1000, scoped, tag = 'input window, operand 0, single buffered']
    #allocation3 [shape = 's32[1]{0}', space=sflag, size = 0x4, scoped, tag = 'scoped memory for tpu_custom_call.1']
    #allocation4 [shape = 's32[1]{0}', space=sflag, size = 0x4, scoped, tag = 'scoped memory for tpu_custom_call.1']
    #allocation5 [shape = 'u8[4096]{0}', space=vmem, size = 0x1000, scoped, tag = 'output window, operand 0, single buffered']
    %6 = vsyncpa [#allocation3], 0
    %7 = vsyncpa [#allocation4], 0
    // Predicated region
    $region2: #{tpu_custom_call.1} parent=1 // pred_check
      _
    $region3: #{tpu_custom_call.1} parent=1 // pred_check_branch
      %9 = sbr.rel (0) target = $region5
    $region4: #{tpu_custom_call.1} parent=1 // pred_region
      %11 = vsyncadd [#allocation3], 0
      %s13 = sshll.u32 %s0, 4
      %s14 = int_to_ptr.hbm [resolvable:$true] %s13
      %s15 = sshll.u32 [#allocation2], 4
      %s16 = int_to_ptr.vmem [resolvable:$true] %s15
      %18 = dma.hbm_to_vmem [thread:$0]  %s14, 128, %s16, [#allocation3]
    $region5: #{tpu_custom_call.1} parent=1 // pred_fallthru
      _
    // Predicated region
    $region6: #{tpu_custom_call.1} parent=1 // pred_check
      _
    $region7: #{tpu_custom_call.1} parent=1 // pred_check_branch
      %20 = sbr.rel (0) target = $region9
    $region8: #{tpu_custom_call.1} parent=1 // pred_region
      %22 = dma.done [#allocation3], 128
    $region9: #{tpu_custom_call.1} parent=1 // pred_fallthru
      _
    %v23 = vld [vmem:[#allocation2] sm:$0xff]
    %24 = vrot.lane.b32.xlu0 %v23, 1
    %v25 = vpop.permute.xlu0 %24
    %26 = vst [vmem:[#allocation5] sm:$0xff] %v25
    // Predicated region
    $region10: #{tpu_custom_call.1} parent=1 // pred_check
      _
    $region11: #{tpu_custom_call.1} parent=1 // pred_check_branch
      %28 = sbr.rel (0) target = $region13
    $region12: #{tpu_custom_call.1} parent=1 // pred_region
      %30 = vsyncadd [#allocation4], 0
      %s32 = sshll.u32 [#allocation5], 4
      %s33 = int_to_ptr.vmem [resolvable:$true] %s32
      %s34 = sshll.u32 %s1, 4
      %s35 = int_to_ptr.hbm [resolvable:$true] %s34
      %37 = dma.vmem_to_hbm [thread:$0]  %s33, 128, %s35, [#allocation4]
    $region13: #{tpu_custom_call.1} parent=1 // pred_fallthru
      _
    // Predicated region
    $region14: #{tpu_custom_call.1} parent=1 // pred_check
      _
    $region15: #{tpu_custom_call.1} parent=1 // pred_check_branch
      %39 = sbr.rel (0) target = $region17
    $region16: #{tpu_custom_call.1} parent=1 // pred_region
      %41 = dma.done [#allocation4], 128
    $region17: #{tpu_custom_call.1} parent=1 // pred_fallthru
      _
    %42 = vsyncpa [#allocation3], 1
    %43 = vsyncpa [#allocation4], 1

</llo_original>
